<compile_context>
chip_gen: v5e
topology: v5e:2x2
jax: 0.10.0
libtpu: 0.0.40
codegen_flags: <defaults>
</compile_context>

<pallas_src>
import functools

import jax
import jax.numpy as jnp
from jax.experimental import pallas as pl
from jax.experimental.pallas import tpu as pltpu

_LANE = 128
_SUBLANE = 8


def _round_up(n, m):
    return ((n + m - 1) // m) * m


def _mlp_softmax_kernel(x_ref, w1_ref, w2_ref, o_ref, *, d2_actual):
    # Two MXU matmuls (bf16 in, f32 acc) + tanh (EUP) + stable softmax.
    x = x_ref[...]                                                  # [TB, D0] bf16
    h = jnp.tanh(jnp.dot(x, w1_ref[...],
                         preferred_element_type=jnp.float32))       # [TB, D1] f32
    logits = jnp.dot(h.astype(w2_ref.dtype), w2_ref[...],
                     preferred_element_type=jnp.float32)            # [TB, D2P] f32
    # Padded output lanes (columns >= d2_actual) come from zero-padded w2
    # columns; mask them out of the softmax so the denominator is correct.
    col = jax.lax.broadcasted_iota(jnp.int32, logits.shape, 1)
    logits = jnp.where(col < d2_actual, logits, jnp.float32(-1e30))
    m = jnp.max(logits, axis=-1, keepdims=True)
    e = jnp.exp(logits - m)
    denom = jnp.sum(e, axis=-1, keepdims=True)
    o_ref[...] = (e * pl.reciprocal(denom, approx=True)).astype(o_ref.dtype)


def classical_nn_forward(x, w1, w2, *, tb=256, compute_dtype=jnp.bfloat16):
    """softmax(tanh(x @ w1) @ w2, axis=-1), fused in one Pallas kernel.

    x:  [B, D0]   w1: [D0, D1]   w2: [D1, D2]   (weights stored [in, out])
    """
    B, D0 = x.shape
    D0w, D1 = w1.shape
    D1w, D2 = w2.shape
    assert D0 == D0w and D1 == D1w

    # Lane-dense output: pad D2 up to a full 128-lane slab.
    D2P = _round_up(D2, _LANE)

    # Batch tile: multiple of 8 sublanes, capped at `tb`, batch zero-padded.
    tb = min(tb, _round_up(B, _SUBLANE))
    B_pad = _round_up(B, tb)

    xc = x.astype(compute_dtype)
    if B_pad != B:
        xc = jnp.pad(xc, ((0, B_pad - B), (0, 0)))
    w1c = w1.astype(compute_dtype)
    w2c = w2.astype(compute_dtype)
    if D2P != D2:
        w2c = jnp.pad(w2c, ((0, 0), (0, D2P - D2)))

    grid = (B_pad // tb,)
    kernel = functools.partial(_mlp_softmax_kernel, d2_actual=D2)

    itemsize = jnp.dtype(compute_dtype).itemsize
    cost = pl.CostEstimate(
        flops=2 * B_pad * (D0 * D1 + D1 * D2P),
        transcendentals=B_pad * (D1 + D2P),
        bytes_accessed=(xc.size * itemsize + w1c.size * itemsize
                        + w2c.size * itemsize + B_pad * D2P * 4),
    )

    out = pl.pallas_call(
        kernel,
        out_shape=jax.ShapeDtypeStruct((B_pad, D2P), jnp.float32),
        grid_spec=pltpu.PrefetchScalarGridSpec(
            num_scalar_prefetch=0,
            grid=grid,
            in_specs=[
                # x stream: tiled along batch, double-buffered by BlockSpec.
                pl.BlockSpec((tb, D0), lambda i: (i, 0)),
                # weights: constant index_map -> stay VMEM-resident.
                pl.BlockSpec((D0, D1), lambda i: (0, 0)),
                pl.BlockSpec((D1, D2P), lambda i: (0, 0)),
            ],
            out_specs=pl.BlockSpec((tb, D2P), lambda i: (i, 0)),
        ),
        compiler_params=pltpu.CompilerParams(
            dimension_semantics=("parallel",),
            vmem_limit_bytes=32 * 1024 * 1024,
        ),
        cost_estimate=cost,
    )(xc, w1c, w2c)

    return out[:B, :D2]


if __name__ == "__main__":
    # size = [8, 32, 4]  -> inputsize=8, outputsize=4, d = 8*32 + 32*4
    size = (8, 32, 4)
    batch = 2

    key = jax.random.PRNGKey(0)
    kx, k1, k2 = jax.random.split(key, 3)
    x = jax.random.normal(kx, (batch, size[0]), dtype=jnp.float32)
    w1 = jax.random.normal(k1, (size[0], size[1]), dtype=jnp.float32) * 0.1
    w2 = jax.random.normal(k2, (size[1], size[2]), dtype=jnp.float32) * 0.1

    out = jax.block_until_ready(classical_nn_forward(x, w1, w2))
    assert out.shape == (batch, size[-1])

    # Reference 1: same bf16-in / f32-accumulate arithmetic as the kernel.
    cd = jnp.bfloat16
    h_ref = jnp.tanh(jnp.dot(x.astype(cd), w1.astype(cd),
                             preferred_element_type=jnp.float32))
    logits_ref = jnp.dot(h_ref.astype(cd), w2.astype(cd),
                         preferred_element_type=jnp.float32)
    ref_bf16 = jax.nn.softmax(logits_ref, axis=-1)
    assert jnp.allclose(out, ref_bf16, atol=2e-3, rtol=2e-3), "mismatch vs bf16 reference"

    # Reference 2: pure f32 module semantics (loose, checks end-to-end math).
    ref_f32 = jax.nn.softmax(jnp.tanh(x @ w1) @ w2, axis=-1)
    assert jnp.allclose(out, ref_f32, atol=5e-2), "mismatch vs f32 reference"

    assert jnp.allclose(jnp.sum(out, axis=-1), 1.0, atol=2e-3)

    # TODO(synk): get_gradient / get_fisher (autograd Jacobian + Fisher outer
    # products) are training-time utilities, not part of forward(); not ported.

    print("KERNEL_OK")
</pallas_src>

<mosaic_0001>
module attributes {stable_mosaic.version = 11 : i64} {
  func.func @_mlp_softmax_kernel(%arg0: i32, %arg1: memref<8x8xbf16, #tpu.memory_space<vmem>>, %arg2: memref<8x32xbf16, #tpu.memory_space<vmem>>, %arg3: memref<32x128xbf16, #tpu.memory_space<vmem>>, %arg4: memref<8x128xf32, #tpu.memory_space<vmem>>) attributes {dimension_semantics = [#tpu.dimension_semantics<parallel>], iteration_bounds = array<i64: 1>, scalar_prefetch = 0 : i64, scratch_operands = 0 : i64, tpu.core_type = #tpu.core_type<tc>, window_params = [{transform_indices = @transform_0, window_bounds = array<i64: 8, 8>}, {pipeline_mode = #tpu.pipeline_mode<synchronous>, transform_indices = @transform_1, window_bounds = array<i64: 8, 32>}, {pipeline_mode = #tpu.pipeline_mode<synchronous>, transform_indices = @transform_2, window_bounds = array<i64: 32, 128>}, {transform_indices = @transform_3, window_bounds = array<i64: 8, 128>}]} {
    %c0 = arith.constant 0 : index
    %c0_0 = arith.constant 0 : index
    %0 = vector.load %arg1[%c0, %c0_0] : memref<8x8xbf16, #tpu.memory_space<vmem>>, vector<8x8xbf16>
    %c0_1 = arith.constant 0 : index
    %c0_2 = arith.constant 0 : index
    %1 = vector.load %arg2[%c0_1, %c0_2] : memref<8x32xbf16, #tpu.memory_space<vmem>>, vector<8x32xbf16>
    %cst = arith.constant dense<0.000000e+00> : vector<8x32xf32>
    %2 = tpu.matmul %0, %1, %cst {dimension_numbers = #tpu.dot_dimension_numbers<[1], [0], [0], [1], [0, 0, 1, 1], [], []>} : vector<8x8xbf16>, vector<8x32xbf16>, vector<8x32xf32> -> vector<8x32xf32>
    %3 = math.tanh %2 : vector<8x32xf32>
    %4 = arith.truncf %3 : vector<8x32xf32> to vector<8x32xbf16>
    %c0_3 = arith.constant 0 : index
    %c0_4 = arith.constant 0 : index
    %5 = vector.load %arg3[%c0_3, %c0_4] : memref<32x128xbf16, #tpu.memory_space<vmem>>, vector<32x128xbf16>
    %cst_5 = arith.constant dense<0.000000e+00> : vector<8x128xf32>
    %6 = tpu.matmul %4, %5, %cst_5 {dimension_numbers = #tpu.dot_dimension_numbers<[1], [0], [0], [1], [0, 0, 1, 1], [], []>} : vector<8x32xbf16>, vector<32x128xbf16>, vector<8x128xf32> -> vector<8x128xf32>
    %7 = tpu.iota {dimensions = array<i32: 1>} : vector<8x128xi32>
    %c4_i32 = arith.constant 4 : i32
    %8 = vector.broadcast %c4_i32 : i32 to vector<8x128xi32>
    %9 = arith.cmpi slt, %7, %8 : vector<8x128xi32>
    %cst_6 = arith.constant -1.000000e+30 : f32
    %10 = vector.broadcast %cst_6 : f32 to vector<8x128xf32>
    %11 = arith.select %9, %6, %10 : vector<8x128xi1>, vector<8x128xf32>
    %cst_7 = arith.constant dense<0xFF800000> : vector<8xf32>
    %12 = vector.multi_reduction <maximumf>, %11, %cst_7 [1] : vector<8x128xf32> to vector<8xf32>
    %13 = vector.shape_cast %12 : vector<8xf32> to vector<8x1xf32>
    %14 = vector.broadcast %13 : vector<8x1xf32> to vector<8x128xf32>
    %15 = arith.subf %11, %14 : vector<8x128xf32>
    %16 = math.exp %15 : vector<8x128xf32>
    %cst_8 = arith.constant dense<0.000000e+00> : vector<8xf32>
    %17 = vector.multi_reduction <add>, %16, %cst_8 [1] : vector<8x128xf32> to vector<8xf32>
    %18 = vector.shape_cast %17 : vector<8xf32> to vector<8x1xf32>
    %19 = tpu.reciprocal %18 {approx = true} : vector<8x1xf32> -> vector<8x1xf32>
    %20 = vector.broadcast %19 : vector<8x1xf32> to vector<8x128xf32>
    %21 = arith.mulf %16, %20 : vector<8x128xf32>
    %c0_9 = arith.constant 0 : index
    %c0_10 = arith.constant 0 : index
    %22 = vector.load %arg4[%c0_9, %c0_10] : memref<8x128xf32, #tpu.memory_space<vmem>>, vector<8x128xf32>
    tpu.vector_store %arg4[%c0_9, %c0_10], %21 {strides = array<i32>} : memref<8x128xf32, #tpu.memory_space<vmem>>, vector<8x128xf32>,
    return
  }
  func.func @transform_0(%arg0: i32) -> (i32, i32) {
    %c0_i32 = arith.constant 0 : i32
    %c0_i32_0 = arith.constant 0 : i32
    return %arg0, %c0_i32 : i32, i32
  }
  func.func @transform_1(%arg0: i32) -> (i32, i32) {
    %c0_i32 = arith.constant 0 : i32
    %c0_i32_0 = arith.constant 0 : i32
    %c0_i32_1 = arith.constant 0 : i32
    return %c0_i32, %c0_i32_0 : i32, i32
  }
  func.func @transform_2(%arg0: i32) -> (i32, i32) {
    %c0_i32 = arith.constant 0 : i32
    %c0_i32_0 = arith.constant 0 : i32
    %c0_i32_1 = arith.constant 0 : i32
    return %c0_i32, %c0_i32_0 : i32, i32
  }
  func.func @transform_3(%arg0: i32) -> (i32, i32) {
    %c0_i32 = arith.constant 0 : i32
    %c0_i32_0 = arith.constant 0 : i32
    return %arg0, %c0_i32 : i32, i32
  }
}

</mosaic_0001>

<llo_original>
// kernel: tpu_custom_call.1
$region0: #{tpu_custom_call.1}
  #allocation0 [shape = 'u32[]', space=smem, size = 0x4, offset = 0x4, fixed_abs, tag = 'smem constant byte address 0x4 - core index']
  #allocation1 [shape = 'u32[72,128]{1,0:T(1,128)}', space=vmem, size = 0x9000, scoped, tag = 'internal scratch']
  %s0 = inlined_call_operand.hbm [shape: bf16[8,8], index: 0, kind: input, shape index: {}]
  %s1 = inlined_call_operand.hbm [shape: bf16[8,32], index: 1, kind: input, shape index: {}]
  %s2 = inlined_call_operand.hbm [shape: bf16[32,128], index: 2, kind: input, shape index: {}]
  %s3 = inlined_call_operand.hbm [shape: f32[8,128], index: 3, kind: output, shape index: {}]
  %s4 = sld [smem:[#allocation0]]
  $region34: #{tpu_custom_call.1} parent=0
    _
  %s6 = ssub.s32 1, %s4
  %s7 = scalar_select 0, %s6, %s4
  $region1: #{tpu_custom_call.1} parent=0
    #allocation2 [shape = 'u8[2048]{0}', space=vmem, size = 0x800, scoped, tag = 'input window, operand 0, single buffered']
    #allocation3 [shape = 's32[1]{0}', space=sflag, size = 0x4, scoped, tag = 'scoped memory for tpu_custom_call.1']
    #allocation4 [shape = 's32[1]{0}', space=sflag, size = 0x4, scoped, tag = 'scoped memory for tpu_custom_call.1']
    #allocation5 [shape = 'u8[2048]{0}', space=vmem, size = 0x800, scoped, tag = 'input window, operand 1, single buffered']
    #allocation6 [shape = 's32[1]{0}', space=sflag, size = 0x4, scoped, tag = 'scoped memory for tpu_custom_call.1']
    #allocation7 [shape = 'u8[8192]{0}', space=vmem, size = 0x2000, scoped, tag = 'input window, operand 2, single buffered']
    #allocation8 [shape = 'u8[4096]{0}', space=vmem, size = 0x1000, scoped, tag = 'output window, operand 0, single buffered']
    %8 = vsyncpa [#allocation3], 0
    %9 = vsyncpa [#allocation6], 0
    %10 = vsyncpa [#allocation4], 0
    // Predicated region
    $region2: #{tpu_custom_call.1} parent=1 // pred_check
      _
    $region3: #{tpu_custom_call.1} parent=1 // pred_check_branch
      %12 = sbr.rel (0) target = $region5
    $region4: #{tpu_custom_call.1} parent=1 // pred_region
      %14 = vsyncadd [#allocation3], 0
      %s16 = sshll.u32 %s0, 4
      %s17 = int_to_ptr.hbm [resolvable:$true] %s16
      %s18 = sshll.u32 [#allocation2], 4
      %s19 = int_to_ptr.vmem [resolvable:$true] %s18
      %21 = dma.hbm_to_vmem [thread:$0]  %s17, 64, %s19, [#allocation3]
    $region5: #{tpu_custom_call.1} parent=1 // pred_fallthru
      _
    // Predicated region
    $region6: #{tpu_custom_call.1} parent=1 // pred_check
      _
    $region7: #{tpu_custom_call.1} parent=1 // pred_check_branch
      %23 = sbr.rel (0) target = $region9
    $region8: #{tpu_custom_call.1} parent=1 // pred_region
      %25 = vsyncadd [#allocation6], 0
      %s27 = sshll.u32 %s1, 4
      %s28 = int_to_ptr.hbm [resolvable:$true] %s27
      %s29 = sshll.u32 [#allocation5], 4
      %s30 = int_to_ptr.vmem [resolvable:$true] %s29
      %32 = dma.hbm_to_vmem [thread:$0]  %s28, 64, %s30, [#allocation6]
    $region9: #{tpu_custom_call.1} parent=1 // pred_fallthru
      _
    // Predicated region
    $region10: #{tpu_custom_call.1} parent=1 // pred_check
      _
    $region11: #{tpu_custom_call.1} parent=1 // pred_check_branch
      %34 = sbr.rel (0) target = $region13
    $region12: #{tpu_custom_call.1} parent=1 // pred_region
      %36 = vsyncadd [#allocation6], 0
      %s37 = sshll.u32 %s2, 4
      %s38 = int_to_ptr.hbm [resolvable:$true] %s37
      %s39 = sshll.u32 [#allocation7], 4
      %s40 = int_to_ptr.vmem [resolvable:$true] %s39
      %45 = dma.hbm_to_vmem [thread:$0]  %s38, 256, %s40, [#allocation6], 64, 64, 4
    $region13: #{tpu_custom_call.1} parent=1 // pred_fallthru
      _
    // Predicated region
    $region14: #{tpu_custom_call.1} parent=1 // pred_check
      _
    $region15: #{tpu_custom_call.1} parent=1 // pred_check_branch
      %47 = sbr.rel (0) target = $region17
    $region16: #{tpu_custom_call.1} parent=1 // pred_region
      %49 = dma.done [#allocation3], 64
    $region17: #{tpu_custom_call.1} parent=1 // pred_fallthru
      _
    // Predicated region
    $region18: #{tpu_custom_call.1} parent=1 // pred_check
      _
    $region19: #{tpu_custom_call.1} parent=1 // pred_check_branch
      %51 = sbr.rel (0) target = $region21
    $region20: #{tpu_custom_call.1} parent=1 // pred_region
      %53 = dma.done [#allocation6], 64
    $region21: #{tpu_custom_call.1} parent=1 // pred_fallthru
      _
    // Predicated region
    $region22: #{tpu_custom_call.1} parent=1 // pred_check
      _
    $region23: #{tpu_custom_call.1} parent=1 // pred_check_branch
      %55 = sbr.rel (0) target = $region25
    $region24: #{tpu_custom_call.1} parent=1 // pred_region
      %57 = dma.done [#allocation6], 256
    $region25: #{tpu_custom_call.1} parent=1 // pred_fallthru
      _
    %v59 = vld [vmem:[#allocation2] sm:$0xf]
    %v60 = vld [vmem:[#allocation5] sm:$0xf]
    %vm61 = vcmask 64512
    %v63 = vsel %vm61, %v59, 0
    %vm65 = vcmask 1043456
    %v67 = vsel %vm65, %v60, 0
    %69 = vmatpush.bf16.msra.mxu0 0
    %70 = vmatpush.bf16.msra.mxu0 0
    %71 = vmatpush.bf16.msra.mxu0 0
    %72 = vmatpush.bf16.msra.mxu0 0
    %73 = vmatpush.bf16.msra.mxu0 0
    %74 = vmatpush.bf16.msra.mxu0 0
    %75 = vmatpush.bf16.msra.mxu0 0
    %76 = vmatpush.bf16.msra.mxu0 %v67
    %77 = vmatmul.bf16.gmra.mxu0 %v63
    %v78 = vpop.f32.mrf.mxu0
    %v79 = vadd.f32 0.0, %v78
    %v80 = vpop.f32.mrf.mxu0
    %81 = vdwg.mxu0
    %v82 = vtanh.pop %v79
    %v83 = vpack.c.bf16 %v82, %v82
    %v84 = vld [vmem:[#allocation7] sm:$0xf]
    %v85 = vld [vmem:[#allocation7 + $0x4] sm:$0xf]
    %v86 = vld [vmem:[#allocation7 + $0x8] sm:$0xf]
    %v87 = vld [vmem:[#allocation7 + $0xc] sm:$0xf]
    %v92 = vunpack.c.l.b16 %v84
    %v93 = vunpack.c.l.b16 %v85
    %v94 = vunpack.c.l.b16 %v86
    %v95 = vunpack.c.l.b16 %v87
    %v96 = vpack.c.b16 %v93, %v92
    %v97 = vpack.c.b16 %v95, %v94
    %vm100 = vcmask 261120
    %v102 = vsel %vm100, %v83, 0
    %104 = vmatpush.bf16.msra.mxu0 0
    %105 = vmatpush.bf16.msra.mxu0 0
    %106 = vmatpush.bf16.msra.mxu0 0
    %107 = vmatpush.bf16.msra.mxu0 0
    %108 = vmatpush.bf16.msra.mxu0 0
    %109 = vmatpush.bf16.msra.mxu0 0
    %110 = vmatpush.bf16.msra.mxu0 %v97
    %111 = vmatpush.bf16.msra.mxu0 %v96
    %112 = vmatmul.bf16.gmra.mxu0 %v102
    %v113 = vpop.f32.mrf.mxu0
    %v114 = vadd.f32 0.0, %v113
    %v115 = vpop.f32.mrf.mxu0
    %116 = vdwg.mxu0
    %v117 = vlaneseq
    %v118 = vand.u32 %v117, 127
    %vm119 = vcmp.lt.s32.totalorder %v118, 4
    %v120 = vsel %vm119, %v114, -1e+30
    %121 = vmax.xlane.f32.xlu0 %v120
    %v122 = vpop.xlane.xlu0 %121
    %v123 = vsub.f32 %v120, %v122
    %v124 = vmul.f32 %v123, 1.442695
    %v125 = vpow.pop %v124
    %126 = vadd.xlane.f32.xlu0 %v125
    %v127 = vpop.xlane.xlu0 %126
    %v128 = vrcp.pop %v127
    %v129 = vmul.f32 %v125, %v128
    %130 = vst [vmem:[#allocation8] sm:$0xff] %v129
    // Predicated region
    $region26: #{tpu_custom_call.1} parent=1 // pred_check
      _
    $region27: #{tpu_custom_call.1} parent=1 // pred_check_branch
      %132 = sbr.rel (0) target = $region29
    $region28: #{tpu_custom_call.1} parent=1 // pred_region
      %134 = vsyncadd [#allocation4], 0
      %s136 = sshll.u32 [#allocation8], 4
      %s137 = int_to_ptr.vmem [resolvable:$true] %s136
      %s138 = sshll.u32 %s3, 4
      %s139 = int_to_ptr.hbm [resolvable:$true] %s138
      %141 = dma.vmem_to_hbm [thread:$0]  %s137, 128, %s139, [#allocation4]
    $region29: #{tpu_custom_call.1} parent=1 // pred_fallthru
      _
    // Predicated region
    $region30: #{tpu_custom_call.1} parent=1 // pred_check
      _
    $region31: #{tpu_custom_call.1} parent=1 // pred_check_branch
      %143 = sbr.rel (0) target = $region33
    $region32: #{tpu_custom_call.1} parent=1 // pred_region
      %145 = dma.done [#allocation4], 128
    $region33: #{tpu_custom_call.1} parent=1 // pred_fallthru
      _
    %146 = vsyncpa [#allocation3], 1
    %147 = vsyncpa [#allocation6], 1
    %148 = vsyncpa [#allocation4], 1

</llo_original>
